<compile_context>
chip_gen: v5e
topology: v5e:2x2
jax: 0.10.0
libtpu: 0.0.40
codegen_flags: <defaults>
</compile_context>

<pallas_src>
import jax
import jax.numpy as jnp
from jax.experimental import pallas as pl
from jax.experimental.pallas import tpu as pltpu

LANE = 128      # vreg lane width: last dim of every block is a multiple of this
SUBLANE = 8     # f32 sublane width: batch tile is a multiple of this


def _round_up(n: int, m: int) -> int:
    return ((n + m - 1) // m) * m


def mlp_kernel(x_ref, w1_ref, b1_ref, w2_ref, b2_ref, o_ref):
    # fc1: (TB, Dp) @ (Dp, Hp) on the MXU, f32 accumulation.
    h = jnp.dot(x_ref[...], w1_ref[...], preferred_element_type=jnp.float32)
    # Bias add + ReLU on the VPU. Padded lanes of b1 are zero, so padded lanes
    # of h stay exactly zero through the ReLU and contribute nothing to fc2.
    h = jnp.maximum(h + b1_ref[...], 0.0)
    # fc2: (TB, Hp) @ (Hp, Cp) on the MXU — H was padded to 128, so this is a
    # full-depth contraction instead of a 5-deep one.
    out = jnp.dot(h, w2_ref[...], preferred_element_type=jnp.float32)
    o_ref[...] = (out + b2_ref[...]).astype(o_ref.dtype)


def neural_net_forward(x, w1, b1, w2, b2, *, block_b: int = 512):
    """Pallas forward pass: fc1 -> ReLU -> fc2 (same semantics as NeuralNet).

    x:  (B, D) f32
    w1: (D, H) f32   b1: (1, H) or (H,) f32
    w2: (H, C) f32   b2: (1, C) or (C,) f32
    returns (B, C) f32
    """
    B, D = x.shape
    H = w1.shape[1]
    C = w2.shape[1]

    # Lane-dense padded sizes (multiples of 128 on every feature axis).
    Dp = _round_up(D, LANE)
    Hp = _round_up(H, LANE)
    Cp = _round_up(C, LANE)

    # Batch tile: multiple of 8 sublanes, capped so big batches stream as tiles.
    TB = min(_round_up(B, SUBLANE), block_b)
    Bp = _round_up(B, TB)

    f32 = jnp.float32
    xp = jnp.zeros((Bp, Dp), f32).at[:B, :D].set(x.astype(f32))
    w1p = jnp.zeros((Dp, Hp), f32).at[:D, :H].set(w1.astype(f32))
    b1p = jnp.zeros((1, Hp), f32).at[0, :H].set(jnp.reshape(b1, (H,)).astype(f32))
    w2p = jnp.zeros((Hp, Cp), f32).at[:H, :C].set(w2.astype(f32))
    b2p = jnp.zeros((1, Cp), f32).at[0, :C].set(jnp.reshape(b2, (C,)).astype(f32))

    grid = (Bp // TB,)
    out_padded = pl.pallas_call(
        mlp_kernel,
        out_shape=jax.ShapeDtypeStruct((Bp, Cp), f32),
        grid_spec=pltpu.PrefetchScalarGridSpec(
            num_scalar_prefetch=0,
            grid=grid,
            in_specs=[
                # x tiles stream over the batch grid...
                pl.BlockSpec((TB, Dp), lambda i: (i, 0)),
                # ...while weights/biases stay VMEM-resident (constant index).
                pl.BlockSpec((Dp, Hp), lambda i: (0, 0)),
                pl.BlockSpec((1, Hp), lambda i: (0, 0)),
                pl.BlockSpec((Hp, Cp), lambda i: (0, 0)),
                pl.BlockSpec((1, Cp), lambda i: (0, 0)),
            ],
            out_specs=pl.BlockSpec((TB, Cp), lambda i: (i, 0)),
        ),
        compiler_params=pltpu.CompilerParams(
            # Batch tiles are independent -> shard across TensorCores (v7x),
            # harmless with a single-step grid at tiny batch sizes.
            dimension_semantics=("parallel",),
        ),
    )(xp, w1p, b1p, w2p, b2p)

    # Strip batch + lane padding outside the kernel.
    return out_padded[:B, :C]


def init_params(key, input_size, hidden_size, num_classes):
    """Deterministic PyTorch-style init: U(-1/sqrt(fan_in), 1/sqrt(fan_in))."""
    k1, k2, k3, k4 = jax.random.split(key, 4)
    bound1 = 1.0 / jnp.sqrt(jnp.float32(input_size))
    bound2 = 1.0 / jnp.sqrt(jnp.float32(hidden_size))
    w1 = jax.random.uniform(k1, (input_size, hidden_size), jnp.float32, -bound1, bound1)
    b1 = jax.random.uniform(k2, (1, hidden_size), jnp.float32, -bound1, bound1)
    w2 = jax.random.uniform(k3, (hidden_size, num_classes), jnp.float32, -bound2, bound2)
    b2 = jax.random.uniform(k4, (1, num_classes), jnp.float32, -bound2, bound2)
    return w1, b1, w2, b2


if __name__ == "__main__":
    # Small shapes consistent with the module: NeuralNet(input_size, hidden_size=5, num_classes)
    batch = 8
    input_size = 16
    hidden_size = 5
    num_classes = 3

    key = jax.random.PRNGKey(0)
    kx, kp = jax.random.split(key)
    x = jax.random.normal(kx, (batch, input_size), jnp.float32)
    w1, b1, w2, b2 = init_params(kp, input_size, hidden_size, num_classes)

    fwd = jax.jit(neural_net_forward)
    out = fwd(x, w1, b1, w2, b2)
    out = jax.block_until_ready(out)

    # Reference check against plain JAX (same semantics as the PyTorch forward).
    ref = jnp.maximum(x @ w1 + b1, 0.0) @ w2 + b2
    assert out.shape == (batch, num_classes)
    # Tolerance accounts for f32-on-MXU matmul rounding differences.
    assert jnp.allclose(out, ref, atol=1e-4, rtol=1e-4)

    print("KERNEL_OK")
</pallas_src>

<mosaic_0001>
module attributes {stable_mosaic.version = 11 : i64} {
  func.func @mlp_kernel(%arg0: i32, %arg1: memref<8x128xf32, #tpu.memory_space<vmem>>, %arg2: memref<128x128xf32, #tpu.memory_space<vmem>>, %arg3: memref<1x128xf32, #tpu.memory_space<vmem>>, %arg4: memref<128x128xf32, #tpu.memory_space<vmem>>, %arg5: memref<1x128xf32, #tpu.memory_space<vmem>>, %arg6: memref<8x128xf32, #tpu.memory_space<vmem>>) attributes {dimension_semantics = [#tpu.dimension_semantics<parallel>], iteration_bounds = array<i64: 1>, scalar_prefetch = 0 : i64, scratch_operands = 0 : i64, tpu.core_type = #tpu.core_type<tc>, window_params = [{transform_indices = @transform_0, window_bounds = array<i64: 8, 128>}, {pipeline_mode = #tpu.pipeline_mode<synchronous>, transform_indices = @transform_1, window_bounds = array<i64: 128, 128>}, {pipeline_mode = #tpu.pipeline_mode<synchronous>, transform_indices = @transform_2, window_bounds = array<i64: 1, 128>}, {pipeline_mode = #tpu.pipeline_mode<synchronous>, transform_indices = @transform_3, window_bounds = array<i64: 128, 128>}, {pipeline_mode = #tpu.pipeline_mode<synchronous>, transform_indices = @transform_4, window_bounds = array<i64: 1, 128>}, {transform_indices = @transform_5, window_bounds = array<i64: 8, 128>}]} {
    %c0 = arith.constant 0 : index
    %c0_0 = arith.constant 0 : index
    %0 = vector.load %arg1[%c0, %c0_0] : memref<8x128xf32, #tpu.memory_space<vmem>>, vector<8x128xf32>
    %c0_1 = arith.constant 0 : index
    %c0_2 = arith.constant 0 : index
    %1 = vector.load %arg2[%c0_1, %c0_2] : memref<128x128xf32, #tpu.memory_space<vmem>>, vector<128x128xf32>
    %cst = arith.constant dense<0.000000e+00> : vector<8x128xf32>
    %2 = tpu.matmul %0, %1, %cst {dimension_numbers = #tpu.dot_dimension_numbers<[1], [0], [0], [1], [0, 0, 1, 1], [], []>} : vector<8x128xf32>, vector<128x128xf32>, vector<8x128xf32> -> vector<8x128xf32>
    %c0_3 = arith.constant 0 : index
    %c0_4 = arith.constant 0 : index
    %3 = vector.load %arg3[%c0_3, %c0_4] : memref<1x128xf32, #tpu.memory_space<vmem>>, vector<1x128xf32>
    %4 = vector.broadcast %3 : vector<1x128xf32> to vector<8x128xf32>
    %5 = arith.addf %2, %4 : vector<8x128xf32>
    %cst_5 = arith.constant 0.000000e+00 : f32
    %6 = vector.broadcast %cst_5 : f32 to vector<8x128xf32>
    %7 = arith.maximumf %5, %6 : vector<8x128xf32>
    %c0_6 = arith.constant 0 : index
    %c0_7 = arith.constant 0 : index
    %8 = vector.load %arg4[%c0_6, %c0_7] : memref<128x128xf32, #tpu.memory_space<vmem>>, vector<128x128xf32>
    %cst_8 = arith.constant dense<0.000000e+00> : vector<8x128xf32>
    %9 = tpu.matmul %7, %8, %cst_8 {dimension_numbers = #tpu.dot_dimension_numbers<[1], [0], [0], [1], [0, 0, 1, 1], [], []>} : vector<8x128xf32>, vector<128x128xf32>, vector<8x128xf32> -> vector<8x128xf32>
    %c0_9 = arith.constant 0 : index
    %c0_10 = arith.constant 0 : index
    %10 = vector.load %arg5[%c0_9, %c0_10] : memref<1x128xf32, #tpu.memory_space<vmem>>, vector<1x128xf32>
    %11 = vector.broadcast %10 : vector<1x128xf32> to vector<8x128xf32>
    %12 = arith.addf %9, %11 : vector<8x128xf32>
    %c0_11 = arith.constant 0 : index
    %c0_12 = arith.constant 0 : index
    %13 = vector.load %arg6[%c0_11, %c0_12] : memref<8x128xf32, #tpu.memory_space<vmem>>, vector<8x128xf32>
    tpu.vector_store %arg6[%c0_11, %c0_12], %12 {strides = array<i32>} : memref<8x128xf32, #tpu.memory_space<vmem>>, vector<8x128xf32>,
    return
  }
  func.func @transform_0(%arg0: i32) -> (i32, i32) {
    %c0_i32 = arith.constant 0 : i32
    %c0_i32_0 = arith.constant 0 : i32
    return %arg0, %c0_i32 : i32, i32
  }
  func.func @transform_1(%arg0: i32) -> (i32, i32) {
    %c0_i32 = arith.constant 0 : i32
    %c0_i32_0 = arith.constant 0 : i32
    %c0_i32_1 = arith.constant 0 : i32
    return %c0_i32, %c0_i32_0 : i32, i32
  }
  func.func @transform_2(%arg0: i32) -> (i32, i32) {
    %c0_i32 = arith.constant 0 : i32
    %c0_i32_0 = arith.constant 0 : i32
    %c0_i32_1 = arith.constant 0 : i32
    return %c0_i32, %c0_i32_0 : i32, i32
  }
  func.func @transform_3(%arg0: i32) -> (i32, i32) {
    %c0_i32 = arith.constant 0 : i32
    %c0_i32_0 = arith.constant 0 : i32
    %c0_i32_1 = arith.constant 0 : i32
    return %c0_i32, %c0_i32_0 : i32, i32
  }
  func.func @transform_4(%arg0: i32) -> (i32, i32) {
    %c0_i32 = arith.constant 0 : i32
    %c0_i32_0 = arith.constant 0 : i32
    %c0_i32_1 = arith.constant 0 : i32
    return %c0_i32, %c0_i32_0 : i32, i32
  }
  func.func @transform_5(%arg0: i32) -> (i32, i32) {
    %c0_i32 = arith.constant 0 : i32
    %c0_i32_0 = arith.constant 0 : i32
    return %arg0, %c0_i32 : i32, i32
  }
}

</mosaic_0001>

<llo_original>
// kernel: neural_net_forward.1
$region0: #{neural_net_forward.1}
  #allocation0 [shape = 'u32[]', space=smem, size = 0x4, offset = 0x4, fixed_abs, tag = 'smem constant byte address 0x4 - core index']
  #allocation1 [shape = 'u32[72,128]{1,0:T(1,128)}', space=vmem, size = 0x9000, scoped, tag = 'internal scratch']
  %s0 = inlined_call_operand.vmem [shape: f32[8,128], index: 0, kind: input, shape index: {}]
  %s1 = inlined_call_operand.vmem [shape: f32[128,128], index: 1, kind: input, shape index: {}]
  %s2 = inlined_call_operand.vmem [shape: f32[1,128], index: 2, kind: input, shape index: {}]
  %s3 = inlined_call_operand.vmem [shape: f32[128,128], index: 3, kind: input, shape index: {}]
  %s4 = inlined_call_operand.vmem [shape: f32[1,128], index: 4, kind: input, shape index: {}]
  %s5 = inlined_call_operand.vmem [shape: f32[8,128], index: 5, kind: output, shape index: {}]
  %s6 = sld [smem:[#allocation0]]
  $region30: #{neural_net_forward.1} parent=0
    _
  %s8 = ssub.s32 1, %s6
  %s9 = scalar_select 0, %s8, %s6
  // Predicated region
  $region2: #{neural_net_forward.1} parent=0 // pred_check
    _
  $region3: #{neural_net_forward.1} parent=0 // pred_check_branch
    %11 = sbr.rel (0) target = $region5
  $region4: #{neural_net_forward.1} parent=0 // pred_region
    _
  $region5: #{neural_net_forward.1} parent=0 // pred_fallthru
    _
  // Predicated region
  $region6: #{neural_net_forward.1} parent=0 // pred_check
    _
  $region7: #{neural_net_forward.1} parent=0 // pred_check_branch
    %13 = sbr.rel (0) target = $region9
  $region8: #{neural_net_forward.1} parent=0 // pred_region
    _
  $region9: #{neural_net_forward.1} parent=0 // pred_fallthru
    _
  // Predicated region
  $region10: #{neural_net_forward.1} parent=0 // pred_check
    _
  $region11: #{neural_net_forward.1} parent=0 // pred_check_branch
    %15 = sbr.rel (0) target = $region13
  $region12: #{neural_net_forward.1} parent=0 // pred_region
    _
  $region13: #{neural_net_forward.1} parent=0 // pred_fallthru
    _
  // Predicated region
  $region14: #{neural_net_forward.1} parent=0 // pred_check
    _
  $region15: #{neural_net_forward.1} parent=0 // pred_check_branch
    %17 = sbr.rel (0) target = $region17
  $region16: #{neural_net_forward.1} parent=0 // pred_region
    _
  $region17: #{neural_net_forward.1} parent=0 // pred_fallthru
    _
  // Predicated region
  $region18: #{neural_net_forward.1} parent=0 // pred_check
    _
  $region19: #{neural_net_forward.1} parent=0 // pred_check_branch
    %19 = sbr.rel (0) target = $region21
  $region20: #{neural_net_forward.1} parent=0 // pred_region
    _
  $region21: #{neural_net_forward.1} parent=0 // pred_fallthru
    _
  %v20 = vld [vmem:[%s0] sm:$0xff]
  %v21 = vld [vmem:[%s1] sm:$0xff]
  %v22 = vld [vmem:[%s1 + $0x8] sm:$0xff]
  %v23 = vld [vmem:[%s1 + $0x10] sm:$0xff]
  %v24 = vld [vmem:[%s1 + $0x18] sm:$0xff]
  %v25 = vld [vmem:[%s1 + $0x20] sm:$0xff]
  %v26 = vld [vmem:[%s1 + $0x28] sm:$0xff]
  %v27 = vld [vmem:[%s1 + $0x30] sm:$0xff]
  %v28 = vld [vmem:[%s1 + $0x38] sm:$0xff]
  %v29 = vld [vmem:[%s1 + $0x40] sm:$0xff]
  %v30 = vld [vmem:[%s1 + $0x48] sm:$0xff]
  %v31 = vld [vmem:[%s1 + $0x50] sm:$0xff]
  %v32 = vld [vmem:[%s1 + $0x58] sm:$0xff]
  %v33 = vld [vmem:[%s1 + $0x60] sm:$0xff]
  %v34 = vld [vmem:[%s1 + $0x68] sm:$0xff]
  %v35 = vld [vmem:[%s1 + $0x70] sm:$0xff]
  %v36 = vld [vmem:[%s1 + $0x78] sm:$0xff]
  %v37 = vld [vmem:[%s2] sm:$0x1]
  %v39 = vperm.slane %v37, 0
  %41 = vmatpush.msra.mxu0 %v36
  %42 = vmatpush.msra.mxu0 %v35
  %43 = vmatpush.msra.mxu0 %v34
  %44 = vmatpush.msra.mxu0 %v33
  %45 = vmatpush.msra.mxu0 %v32
  %46 = vmatpush.msra.mxu0 %v31
  %47 = vmatpush.msra.mxu0 %v30
  %48 = vmatpush.msra.mxu0 %v29
  %49 = vmatpush.msra.mxu0 %v28
  %50 = vmatpush.msra.mxu0 %v27
  %51 = vmatpush.msra.mxu0 %v26
  %52 = vmatpush.msra.mxu0 %v25
  %53 = vmatpush.msra.mxu0 %v24
  %54 = vmatpush.msra.mxu0 %v23
  %55 = vmatpush.msra.mxu0 %v22
  %56 = vmatpush.msra.mxu0 %v21
  %57 = vmatmul.f32.gmra.mxu0 %v20
  %v58 = vpop.f32.mrf.mxu0
  %v59 = vadd.f32 %v39, %v58
  %60 = vdwg.mxu0
  %v61 = vmax.f32 %v59, 0.0
  %v62 = vld [vmem:[%s3] sm:$0xff]
  %v63 = vld [vmem:[%s3 + $0x8] sm:$0xff]
  %v64 = vld [vmem:[%s3 + $0x10] sm:$0xff]
  %v65 = vld [vmem:[%s3 + $0x18] sm:$0xff]
  %v66 = vld [vmem:[%s3 + $0x20] sm:$0xff]
  %v67 = vld [vmem:[%s3 + $0x28] sm:$0xff]
  %v68 = vld [vmem:[%s3 + $0x30] sm:$0xff]
  %v69 = vld [vmem:[%s3 + $0x38] sm:$0xff]
  %v70 = vld [vmem:[%s3 + $0x40] sm:$0xff]
  %v71 = vld [vmem:[%s3 + $0x48] sm:$0xff]
  %v72 = vld [vmem:[%s3 + $0x50] sm:$0xff]
  %v73 = vld [vmem:[%s3 + $0x58] sm:$0xff]
  %v74 = vld [vmem:[%s3 + $0x60] sm:$0xff]
  %v75 = vld [vmem:[%s3 + $0x68] sm:$0xff]
  %v76 = vld [vmem:[%s3 + $0x70] sm:$0xff]
  %v77 = vld [vmem:[%s3 + $0x78] sm:$0xff]
  %v78 = vld [vmem:[%s4] sm:$0x1]
  %v80 = vperm.slane %v78, 0
  %82 = vmatpush.msra.mxu0 %v77
  %83 = vmatpush.msra.mxu0 %v76
  %84 = vmatpush.msra.mxu0 %v75
  %85 = vmatpush.msra.mxu0 %v74
  %86 = vmatpush.msra.mxu0 %v73
  %87 = vmatpush.msra.mxu0 %v72
  %88 = vmatpush.msra.mxu0 %v71
  %89 = vmatpush.msra.mxu0 %v70
  %90 = vmatpush.msra.mxu0 %v69
  %91 = vmatpush.msra.mxu0 %v68
  %92 = vmatpush.msra.mxu0 %v67
  %93 = vmatpush.msra.mxu0 %v66
  %94 = vmatpush.msra.mxu0 %v65
  %95 = vmatpush.msra.mxu0 %v64
  %96 = vmatpush.msra.mxu0 %v63
  %97 = vmatpush.msra.mxu0 %v62
  %98 = vmatmul.f32.gmra.mxu0 %v61
  %v99 = vpop.f32.mrf.mxu0
  %v100 = vadd.f32 %v80, %v99
  %101 = vdwg.mxu0
  %102 = vst [vmem:[%s5] sm:$0xff] %v100
  // Predicated region
  $region22: #{neural_net_forward.1} parent=0 // pred_check
    _
  $region23: #{neural_net_forward.1} parent=0 // pred_check_branch
    %104 = sbr.rel (0) target = $region25
  $region24: #{neural_net_forward.1} parent=0 // pred_region
    _
  $region25: #{neural_net_forward.1} parent=0 // pred_fallthru
    _
  // Predicated region
  $region26: #{neural_net_forward.1} parent=0 // pred_check
    _
  $region27: #{neural_net_forward.1} parent=0 // pred_check_branch
    %106 = sbr.rel (0) target = $region29
  $region28: #{neural_net_forward.1} parent=0 // pred_region
    _
  $region29: #{neural_net_forward.1} parent=0 // pred_fallthru
    _

</llo_original>
